<compile_context>
chip_gen: v6e
topology: v6e:2x2x1
jax: 0.10.0
libtpu: 0.0.40
codegen_flags: <defaults>
</compile_context>

<pallas_src>
import functools

import jax
import jax.numpy as jnp
from jax import lax
from jax.experimental import pallas as pl
from jax.experimental.pallas import tpu as pltpu

_LANE = 128
_SUBLANES = 8                      # packed rows: [u0,u1, p0,p1, d0,d1, pr0,pr1]
_OUT_ROWS = 16                     # 0:8 per-lane column sums, 8:10 u*d, 10:12 p*d
_DEFAULT_TILE_LANES = 256 * 1024   # 8 rows * 256Ki lanes * 4 B = 8 MiB per tile


def _round_up(a, m):
    return ((a + m - 1) // m) * m


def _fair_loss_kernel(packed_ref, out_ref, sums_sc, prod_sc, *, num_chunks, unroll):
    """Partial reduction of one (8, tn) tile of the packed operand.

    packed_ref rows are [u0, u1, p0, p1, d0, d1, pred0, pred1] with the batch
    running along lanes (two halves per stream).  Lane-wide partial sums are
    accumulated in VMEM scratch across the "arbitrary" grid axis and written
    to this shard's output block once, at the last step.
    """
    t = pl.program_id(1)

    @pl.when(t == 0)
    def _init():
        sums_sc[...] = jnp.zeros_like(sums_sc)
        prod_sc[...] = jnp.zeros_like(prod_sc)

    def body(c, carry):
        s, pu, pp = carry
        off = pl.multiple_of(c * _LANE, _LANE)
        chunk = packed_ref[:, pl.ds(off, _LANE)]        # (8, 128) f32, one vreg
        d = chunk[4:6, :]                               # desire halves
        return (s + chunk,                              # column sums (all rows)
                pu + chunk[0:2, :] * d,                 # underpriv * desire
                pp + chunk[2:4, :] * d)                 # priv * desire

    init = (jnp.zeros((_SUBLANES, _LANE), jnp.float32),
            jnp.zeros((2, _LANE), jnp.float32),
            jnp.zeros((2, _LANE), jnp.float32))
    s, pu, pp = lax.fori_loop(0, num_chunks, body, init, unroll=unroll)

    sums_sc[...] += s
    prod_sc[0:2, :] += pu
    prod_sc[2:4, :] += pp

    @pl.when(t == pl.num_programs(1) - 1)
    def _finalize():
        out_ref[0, 0:8, :] = sums_sc[...]               # per-lane column sums
        out_ref[0, 8:16, :] = prod_sc[...]              # rows 0:2 u*d, 2:4 p*d


@functools.partial(
    jax.jit,
    static_argnames=("s_start_index", "y_start_index", "underpriv_index",
                     "priv_index", "undesire_index", "desire_index",
                     "tile_lanes_cap", "num_shards"))
def fair_loss_forward(x, crit_fake_pred, lamda, nu, *,
                      s_start_index, y_start_index,
                      underpriv_index, priv_index,
                      undesire_index, desire_index,
                      tile_lanes_cap=_DEFAULT_TILE_LANES,
                      num_shards=2):
    """Pallas implementation of FairLossFunc.forward. Returns a scalar f32."""
    del undesire_index  # unused by the reference forward pass
    n = x.shape[0]
    pred = crit_fake_pred.reshape(-1)
    if pred.shape[0] != n:
        raise ValueError("crit_fake_pred must hold one value per batch row")

    # --- prologue: slice only the 3 columns used, cast AFTER slicing -------
    u = x[:, s_start_index + underpriv_index].astype(jnp.float32)
    p = x[:, s_start_index + priv_index].astype(jnp.float32)
    d = x[:, y_start_index + desire_index].astype(jnp.float32)
    pr = pred.astype(jnp.float32)

    # --- tiling arithmetic (all static) -------------------------------------
    nc = max(1, int(num_shards))                       # leading "parallel" axis
    lanes_needed = pl.cdiv(n, 2)                       # two batch rows per lane
    per_shard = pl.cdiv(lanes_needed, nc)
    cap = max(_LANE, (int(tile_lanes_cap) // _LANE) * _LANE)
    tn = min(cap, _round_up(per_shard, _LANE))
    num_tiles = pl.cdiv(per_shard, tn)
    tn = _round_up(pl.cdiv(per_shard, num_tiles), _LANE)   # shrink: min padding
    lanes = nc * num_tiles * tn
    n_pad = 2 * lanes

    # --- sublane- and lane-dense packing: (8, lanes), zero padded ----------
    cols = jnp.stack([u, p, d, pr], axis=0)            # (4, n)
    cols = jnp.pad(cols, ((0, 0), (0, n_pad - n)))
    packed = cols.reshape(4, 2, lanes).reshape(_SUBLANES, lanes)

    num_chunks = tn // _LANE
    kernel = functools.partial(_fair_loss_kernel,
                               num_chunks=num_chunks,
                               unroll=min(8, num_chunks))
    tile_bytes = _SUBLANES * tn * 4
    vmem_limit = max(32 * 1024 * 1024, 2 * tile_bytes + 8 * 1024 * 1024)
    t_extent = num_tiles

    parts = pl.pallas_call(
        kernel,
        out_shape=jax.ShapeDtypeStruct((nc, _OUT_ROWS, _LANE), jnp.float32),
        grid_spec=pltpu.PrefetchScalarGridSpec(
            num_scalar_prefetch=0,
            grid=(nc, t_extent),
            in_specs=[pl.BlockSpec((_SUBLANES, tn),
                                   lambda c, t: (0, c * t_extent + t))],
            out_specs=pl.BlockSpec((1, _OUT_ROWS, _LANE),
                                   lambda c, t: (c, 0, 0)),
            scratch_shapes=[pltpu.VMEM((_SUBLANES, _LANE), jnp.float32),
                            pltpu.VMEM((_SUBLANES, _LANE), jnp.float32)]),
        compiler_params=pltpu.CompilerParams(
            dimension_semantics=("parallel", "arbitrary"),
            vmem_limit_bytes=vmem_limit),
    )(packed)

    # --- scalar epilogue (a handful of flops; lamda/nu stay traced) --------
    tot = jnp.sum(parts, axis=(0, 2))                  # (16,) cross-shard/lane
    s_u = tot[0] + tot[1]
    s_p = tot[2] + tot[3]
    pred_sum = tot[6] + tot[7]
    sum_ud = tot[8] + tot[9]
    sum_pd = tot[10] + tot[11]

    inv_n = 1.0 / n
    mean_pred = pred_sum / crit_fake_pred.size
    disp = (-1.0 * lamda) * (sum_ud * inv_n / s_u - sum_pd * inv_n / s_p) - mean_pred
    taxa = nu * jnp.abs(s_p - s_u) * inv_n
    return disp + taxa


def _reference_forward(x, crit_fake_pred, lamda, nu, *,
                       s_start_index, y_start_index,
                       underpriv_index, priv_index,
                       undesire_index, desire_index):
    # Pure-JAX mirror of the PyTorch module, for a sanity check.
    del undesire_index
    xf = x.astype(jnp.float32)
    G = xf[:, s_start_index:s_start_index + 2]
    I = xf[:, y_start_index:y_start_index + 2]
    s_u = xf[:, s_start_index + underpriv_index].sum()
    s_p = xf[:, s_start_index + priv_index].sum()
    disp = (-1.0 * lamda * (jnp.mean(G[:, underpriv_index] * I[:, desire_index]) / s_u
                            - jnp.mean(G[:, priv_index] * I[:, desire_index]) / s_p)
            - 1.0 * jnp.mean(crit_fake_pred.astype(jnp.float32)))
    taxa = nu * jnp.mean(jnp.abs(s_p - s_u) / x.shape[0])
    return disp + taxa


if __name__ == "__main__":
    idx = dict(s_start_index=4, y_start_index=8,
               underpriv_index=0, priv_index=1,
               undesire_index=0, desire_index=1)
    D = 16
    key = jax.random.PRNGKey(0)
    k1, k2, k3, k4 = jax.random.split(key, 4)

    # Case 1: tiny batch (single tile per shard).
    N1 = 8
    x1 = jax.random.uniform(k1, (N1, D), jnp.float32, minval=0.1, maxval=1.0)
    pred1 = jax.random.normal(k2, (N1, 1), jnp.float32)
    out1 = jax.block_until_ready(fair_loss_forward(x1, pred1, 0.5, 0.3, **idx))
    ref1 = _reference_forward(x1, pred1, 0.5, 0.3, **idx)
    assert jnp.allclose(out1, ref1, rtol=1e-5, atol=1e-5), (out1, ref1)

    # Case 2: odd batch with several grid steps per shard (exercises the
    # cross-step accumulation, both shards, and the zero padding).
    N2 = 701
    x2 = jax.random.uniform(k3, (N2, D), jnp.float32, minval=0.1, maxval=1.0)
    pred2 = jax.random.normal(k4, (N2, 1), jnp.float32)
    out2 = jax.block_until_ready(
        fair_loss_forward(x2, pred2, 0.7, 0.1, tile_lanes_cap=128, **idx))
    ref2 = _reference_forward(x2, pred2, 0.7, 0.1, **idx)
    assert jnp.allclose(out2, ref2, rtol=1e-5, atol=1e-5), (out2, ref2)

    print("KERNEL_OK")
</pallas_src>

<mosaic_0001>
module attributes {stable_mosaic.version = 11 : i64} {
  func.func @_fair_loss_kernel(%arg0: i32, %arg1: i32, %arg2: memref<8x128xf32, #tpu.memory_space<vmem>>, %arg3: memref<1x16x128xf32, #tpu.memory_space<vmem>>, %arg4: memref<8x128xf32, #tpu.memory_space<vmem>>, %arg5: memref<8x128xf32, #tpu.memory_space<vmem>>) attributes {dimension_semantics = [#tpu.dimension_semantics<parallel>, #tpu.dimension_semantics<arbitrary>], iteration_bounds = array<i64: 2, 1>, scalar_prefetch = 0 : i64, scratch_operands = 2 : i64, tpu.core_type = #tpu.core_type<tc>, window_params = [{transform_indices = @transform_0, window_bounds = array<i64: 8, 128>}, {transform_indices = @transform_1, window_bounds = array<i64: 1, 16, 128>}]} {
    %c0_i32 = arith.constant 0 : i32
    %0 = arith.cmpi eq, %arg1, %c0_i32 : i32
    %1 = arith.extui %0 : i1 to i32
    %c0_i32_0 = arith.constant 0 : i32
    %2 = arith.cmpi ne, %1, %c0_i32_0 : i32
    scf.if %2 {
      %cst_17 = arith.constant 0.000000e+00 : f32
      %30 = vector.broadcast %cst_17 : f32 to vector<8x128xf32>
      %c0_18 = arith.constant 0 : index
      %c0_19 = arith.constant 0 : index
      %31 = vector.load %arg4[%c0_18, %c0_19] : memref<8x128xf32, #tpu.memory_space<vmem>>, vector<8x128xf32>
      tpu.vector_store %arg4[%c0_18, %c0_19], %30 {strides = array<i32>} : memref<8x128xf32, #tpu.memory_space<vmem>>, vector<8x128xf32>,
      %cst_20 = arith.constant 0.000000e+00 : f32
      %32 = vector.broadcast %cst_20 : f32 to vector<8x128xf32>
      %c0_21 = arith.constant 0 : index
      %c0_22 = arith.constant 0 : index
      %33 = vector.load %arg5[%c0_21, %c0_22] : memref<8x128xf32, #tpu.memory_space<vmem>>, vector<8x128xf32>
      tpu.vector_store %arg5[%c0_21, %c0_22], %32 {strides = array<i32>} : memref<8x128xf32, #tpu.memory_space<vmem>>, vector<8x128xf32>,
    } else {
    }
    %cst = arith.constant 0.000000e+00 : f32
    %3 = vector.broadcast %cst : f32 to vector<8x128xf32>
    %cst_1 = arith.constant 0.000000e+00 : f32
    %4 = vector.broadcast %cst_1 : f32 to vector<2x128xf32>
    %cst_2 = arith.constant 0.000000e+00 : f32
    %5 = vector.broadcast %cst_2 : f32 to vector<2x128xf32>
    %c0_i32_3 = arith.constant 0 : i32
    %c128_i32 = arith.constant 128 : i32
    %6 = arith.muli %c0_i32_3, %c128_i32 : i32
    %7 = tpu.assume_multiple %6, 128 : i32
    %c0 = arith.constant 0 : index
    %8 = arith.index_cast %7 : i32 to index
    %9 = vector.load %arg2[%c0, %8] : memref<8x128xf32, #tpu.memory_space<vmem>>, vector<8x128xf32>
    %10 = vector.extract_strided_slice %9 {offsets = [4, 0], sizes = [2, 128], strides = [1, 1]} : vector<8x128xf32> to vector<2x128xf32>
    %11 = arith.addf %3, %9 : vector<8x128xf32>
    %12 = vector.extract_strided_slice %9 {offsets = [0, 0], sizes = [2, 128], strides = [1, 1]} : vector<8x128xf32> to vector<2x128xf32>
    %13 = arith.mulf %12, %10 : vector<2x128xf32>
    %14 = arith.addf %4, %13 : vector<2x128xf32>
    %15 = vector.extract_strided_slice %9 {offsets = [2, 0], sizes = [2, 128], strides = [1, 1]} : vector<8x128xf32> to vector<2x128xf32>
    %16 = arith.mulf %15, %10 : vector<2x128xf32>
    %17 = arith.addf %5, %16 : vector<2x128xf32>
    %c1_i32 = arith.constant 1 : i32
    %c0_4 = arith.constant 0 : index
    %c0_5 = arith.constant 0 : index
    %18 = vector.load %arg4[%c0_4, %c0_5] : memref<8x128xf32, #tpu.memory_space<vmem>>, vector<8x128xf32>
    %19 = arith.addf %18, %11 : vector<8x128xf32>
    %c0_6 = arith.constant 0 : index
    %c0_7 = arith.constant 0 : index
    %20 = vector.load %arg4[%c0_6, %c0_7] : memref<8x128xf32, #tpu.memory_space<vmem>>, vector<8x128xf32>
    tpu.vector_store %arg4[%c0_6, %c0_7], %19 {strides = array<i32>} : memref<8x128xf32, #tpu.memory_space<vmem>>, vector<8x128xf32>,
    %c0_8 = arith.constant 0 : index
    %c0_9 = arith.constant 0 : index
    %21 = vector.load %arg5[%c0_8, %c0_9] : memref<8x128xf32, #tpu.memory_space<vmem>>, vector<2x128xf32>
    %22 = arith.addf %21, %14 : vector<2x128xf32>
    %c0_10 = arith.constant 0 : index
    %c0_11 = arith.constant 0 : index
    %23 = vector.load %arg5[%c0_10, %c0_11] : memref<8x128xf32, #tpu.memory_space<vmem>>, vector<2x128xf32>
    tpu.vector_store %arg5[%c0_10, %c0_11], %22 {strides = array<i32>} : memref<8x128xf32, #tpu.memory_space<vmem>>, vector<2x128xf32>,
    %c2 = arith.constant 2 : index
    %c0_12 = arith.constant 0 : index
    %24 = vector.load %arg5[%c2, %c0_12] : memref<8x128xf32, #tpu.memory_space<vmem>>, vector<2x128xf32>
    %25 = arith.addf %24, %17 : vector<2x128xf32>
    %c2_13 = arith.constant 2 : index
    %c0_14 = arith.constant 0 : index
    %26 = vector.load %arg5[%c2_13, %c0_14] : memref<8x128xf32, #tpu.memory_space<vmem>>, vector<2x128xf32>
    tpu.vector_store %arg5[%c2_13, %c0_14], %25 {strides = array<i32>} : memref<8x128xf32, #tpu.memory_space<vmem>>, vector<2x128xf32>,
    %c0_i32_15 = arith.constant 0 : i32
    %27 = arith.cmpi eq, %arg1, %c0_i32_15 : i32
    %28 = arith.extui %27 : i1 to i32
    %c0_i32_16 = arith.constant 0 : i32
    %29 = arith.cmpi ne, %28, %c0_i32_16 : i32
    scf.if %29 {
      %c0_17 = arith.constant 0 : index
      %c0_18 = arith.constant 0 : index
      %30 = vector.load %arg4[%c0_17, %c0_18] : memref<8x128xf32, #tpu.memory_space<vmem>>, vector<8x128xf32>
      %c0_19 = arith.constant 0 : index
      %c0_20 = arith.constant 0 : index
      %c0_21 = arith.constant 0 : index
      %31 = vector.load %arg3[%c0_19, %c0_20, %c0_21] : memref<1x16x128xf32, #tpu.memory_space<vmem>>, vector<1x8x128xf32>
      %32 = vector.shape_cast %31 : vector<1x8x128xf32> to vector<8x128xf32>
      %33 = vector.shape_cast %30 : vector<8x128xf32> to vector<1x8x128xf32>
      tpu.vector_store %arg3[%c0_19, %c0_20, %c0_21], %33 {strides = array<i32>} : memref<1x16x128xf32, #tpu.memory_space<vmem>>, vector<1x8x128xf32>,
      %c0_22 = arith.constant 0 : index
      %c0_23 = arith.constant 0 : index
      %34 = vector.load %arg5[%c0_22, %c0_23] : memref<8x128xf32, #tpu.memory_space<vmem>>, vector<8x128xf32>
      %c0_24 = arith.constant 0 : index
      %c8 = arith.constant 8 : index
      %c0_25 = arith.constant 0 : index
      %35 = vector.load %arg3[%c0_24, %c8, %c0_25] : memref<1x16x128xf32, #tpu.memory_space<vmem>>, vector<1x8x128xf32>
      %36 = vector.shape_cast %35 : vector<1x8x128xf32> to vector<8x128xf32>
      %37 = vector.shape_cast %34 : vector<8x128xf32> to vector<1x8x128xf32>
      tpu.vector_store %arg3[%c0_24, %c8, %c0_25], %37 {strides = array<i32>} : memref<1x16x128xf32, #tpu.memory_space<vmem>>, vector<1x8x128xf32>,
    } else {
    }
    return
  }
  func.func @transform_0(%arg0: i32, %arg1: i32) -> (i32, i32) {
    %c1_i32 = arith.constant 1 : i32
    %0 = arith.muli %arg0, %c1_i32 : i32
    %1 = arith.addi %0, %arg1 : i32
    %c0_i32 = arith.constant 0 : i32
    %c0_i32_0 = arith.constant 0 : i32
    return %c0_i32, %1 : i32, i32
  }
  func.func @transform_1(%arg0: i32, %arg1: i32) -> (i32, i32, i32) {
    %c0_i32 = arith.constant 0 : i32
    %c0_i32_0 = arith.constant 0 : i32
    %c0_i32_1 = arith.constant 0 : i32
    return %arg0, %c0_i32, %c0_i32_0 : i32, i32, i32
  }
}

</mosaic_0001>

<llo_original>
// kernel: fair_loss_forward.1
$region0: #{fair_loss_forward.1}
  #allocation0 [shape = 'u32[]', space=smem, size = 0x4, offset = 0x4, fixed_abs, tag = 'smem constant byte address 0x4 - core index']
  #allocation1 [shape = 'u32[144,128]{1,0:T(1,128)}', space=vmem, size = 0x12000, scoped, tag = 'internal scratch']
  #allocation2 [shape = 'f32[8,128]{1,0:T(8,128)}', space=vmem, size = 0x1000, scoped, tag = 'scratch operand']
  #allocation3 [shape = 'f32[8,128]{1,0:T(8,128)}', space=vmem, size = 0x1000, scoped, tag = 'scratch operand']
  %s0 = inlined_call_operand.vmem [shape: f32[8,256], index: 0, kind: input, shape index: {}]
  %s1 = inlined_call_operand.vmem [shape: f32[2,16,128], index: 1, kind: output, shape index: {}]
  %s2 = sld [smem:[#allocation0]]
  $region45: #{fair_loss_forward.1} parent=0
    _
  %s4 = ssub.s32 1, %s2
  %s5 = scalar_select 0, %s4, %s2
  loop: start=0, step=1, limit=4
  $region2: #{fair_loss_forward.1} parent=0 // loop_pre_header
    _
  $region3: #{fair_loss_forward.1} parent=0 // loop_header
    %s7 = sphi 0, %s11
    %p8 = scmp.ge.s32.totalorder %s7, 4
    %s14 = sphi 0, %s26
    %s15 = sphi 0, %s22
    %s16 = sphi 0, %s14
    %s17 = sphi 0, %s15
    %s18 = sphi 0, %s16
    %s19 = sphi 0, %s17
    %s31 = sphi 0, %s33
    %s34 = sphi 0, %s31
    %s35 = sphi 0, %s34
    %s51 = sphi 0, %s35
    %s57 = sphi 0, %s59
    %s60 = sphi 0, %s57
    %s61 = sphi 0, %s60
    %s77 = sphi 0, %s61
  $region4: #{fair_loss_forward.1} parent=0 // loop_header_branch
    %10 = sbr.rel (%p8) target = $region8
  $region5: #{fair_loss_forward.1} parent=0 // loop_body
    %s12 = ssub.s32 %s7, 1
    %s13 = ssub.s32 %s7, 2
    %s20 = sadd.s32 1, %s15
    %p21 = scmp.ge.s32.totalorder %s20, 1
    %s22 = scalar_select %p21, 0, %s20
    %s23 = sadd.s32 1, %s14
    %s24 = scalar_select %p21, %s23, %s14
    %p25 = scmp.ge.s32.totalorder %s24, 2
    %s26 = scalar_select %p25, 0, %s24
    %s27 = sadd.s32 %s14, %s15
    %s28 = sadd.s32 %s26, %s22
    %s29 = ssub.s32 %s27, %s28
    %p30 = scmp.eq.s32.totalorder %s29, 0
    %s32 = sadd.s32 %s31, 1
    %s33 = scalar_select %p30, %s31, %s32
    %p36 = pneg %p30
    %p37 = scmp.eq.s32.totalorder %s7, 1
    %p38 = por %p36, %p37
    %p39 = scmp.ne.s32.totalorder %s31, %s34
    %p40 = scmp.eq.s32.totalorder %s7, 0
    %p41 = por %p39, %p40
    %p42 = scmp.ne.s32.totalorder %s31, %s34
    %p43 = scmp.eq.s32.totalorder %s12, 1
    %p44 = por %p42, %p43
    %p45 = scmp.ne.s32.totalorder %s34, %s35
    %p46 = scmp.eq.s32.totalorder %s12, 0
    %p47 = por %p45, %p46
    %p48 = scmp.ne.s32.totalorder %s34, %s35
    %p49 = scmp.eq.s32.totalorder %s13, 1
    %p50 = por %p48, %p49
    %p52 = scmp.ne.s32.totalorder %s35, %s51
    %p53 = scmp.eq.s32.totalorder %s13, 0
    %p54 = por %p52, %p53
    %s55 = ssub.s32 %s14, %s26
    %p56 = scmp.eq.s32.totalorder %s55, 0
    %s58 = sadd.s32 %s57, 1
    %s59 = scalar_select %p56, %s57, %s58
    %p62 = pneg %p56
    %p63 = scmp.eq.s32.totalorder %s7, 1
    %p64 = por %p62, %p63
    %p65 = scmp.ne.s32.totalorder %s57, %s60
    %p66 = scmp.eq.s32.totalorder %s7, 0
    %p67 = por %p65, %p66
    %p68 = scmp.ne.s32.totalorder %s57, %s60
    %p69 = scmp.eq.s32.totalorder %s12, 1
    %p70 = por %p68, %p69
    %p71 = scmp.ne.s32.totalorder %s60, %s61
    %p72 = scmp.eq.s32.totalorder %s12, 0
    %p73 = por %p71, %p72
    %p74 = scmp.ne.s32.totalorder %s60, %s61
    %p75 = scmp.eq.s32.totalorder %s13, 1
    %p76 = por %p74, %p75
    %p78 = scmp.ne.s32.totalorder %s61, %s77
    %p79 = scmp.eq.s32.totalorder %s13, 0
    %p80 = por %p78, %p79
    %p81 = scmp.le.s32.totalorder 1, %s7
    %p82 = scmp.lt.s32.totalorder %s7, 3
    %p83 = pnand %p81, %p82
    %p84 = pneg %p83
    // Predicated region
    $region9: #{fair_loss_forward.1} parent=5 // pred_check
      _
    $region10: #{fair_loss_forward.1} parent=5 // pred_check_branch
      %86 = sbr.rel (%p83) target = $region12
    $region11: #{fair_loss_forward.1} parent=5 // pred_region
      %s87 = ssub.s32 %s7, 1
    $region12: #{fair_loss_forward.1} parent=5 // pred_fallthru
      _
    %p88 = scmp.lt.s32.totalorder %s7, 2
    // Predicated region
    $region13: #{fair_loss_forward.1} parent=5 // pred_check
      %p89 = pneg %p88
    $region14: #{fair_loss_forward.1} parent=5 // pred_check_branch
      %91 = sbr.rel (%p89) target = $region16
    $region15: #{fair_loss_forward.1} parent=5 // pred_region
      // Predicated region
      $region17: #{fair_loss_forward.1} parent=15 // pred_check
        %p92 = pneg %p41
      $region18: #{fair_loss_forward.1} parent=15 // pred_check_branch
        %94 = sbr.rel (%p92) target = $region20
      $region19: #{fair_loss_forward.1} parent=15 // pred_region
        %s95 = sadd.s32 %s14, %s15
        %p96 = scmp.lt.s32.totalorder %s95, 1
        %s97 = scalar_select %p96, %s95, 1
        %s98 = smul.addr %s97, 8
        %s99 = scalar_lea.vmem %s0, %s98
        %s100 = sadd.s32 %s14, %s15
      $region20: #{fair_loss_forward.1} parent=15 // pred_fallthru
        _
    $region16: #{fair_loss_forward.1} parent=5 // pred_fallthru
      _
    %p101 = scmp.le.s32.totalorder 1, %s7
    %p102 = scmp.lt.s32.totalorder %s7, 3
    %p103 = pnand %p101, %p102
    %p104 = pneg %p103
    // Predicated region
    $region21: #{fair_loss_forward.1} parent=5 // pred_check
      _
    $region22: #{fair_loss_forward.1} parent=5 // pred_check_branch
      %106 = sbr.rel (%p103) target = $region24
    $region23: #{fair_loss_forward.1} parent=5 // pred_region
      %s107 = ssub.s32 %s7, 1
      %s108 = sadd.s32 %s16, %s17
      %p109 = scmp.lt.s32.totalorder %s108, 1
      %s110 = scalar_select %p109, %s108, 1
      %s111 = smul.addr %s110, 8
      %s112 = scalar_lea.vmem %s0, %s111
      %p113 = pneg %p47
      %p114 = pneg %p44
      %p115 = pneg %p73
      %p116 = pneg %p70
      %p117 = scmp.lt.s32.totalorder %s16, 1
      %s118 = scalar_select %p117, %s16, 1
      %s119 = smul.addr %s118, 2
      %s120 = smul.addr %s119, 8
      %s121 = scalar_lea.vmem %s1, %s120
      %s122 = sadd.s32 %s16, %s17
      %p123 = scmp.lt.s32.totalorder %s122, 1
      %s124 = scalar_select %p123, %s122, 1
      %s125 = smul.addr %s124, 8
      %s126 = scalar_lea.vmem %s0, %s125
      %s127 = sadd.s32 %s16, %s17
      %p128 = scmp.lt.s32.totalorder %s16, 1
      %s129 = scalar_select %p128, %s16, 1
      %s130 = smul.addr %s129, 2
      %s131 = smul.addr %s130, 8
      %s132 = scalar_lea.vmem %s1, %s131
      %p133 = scmp.eq.s32.totalorder %s17, 0
      // Predicated region
      $region25: #{fair_loss_forward.1} parent=23 // pred_check
        %p134 = pneg %p133
      $region26: #{fair_loss_forward.1} parent=23 // pred_check_branch
        %136 = sbr.rel (%p134) target = $region28
      $region27: #{fair_loss_forward.1} parent=23 // pred_region
        %137 = vst [vmem:[#allocation2] sm:$0xff] 0.0
        %138 = vst [vmem:[#allocation3] sm:$0xff] 0.0
      $region28: #{fair_loss_forward.1} parent=23 // pred_fallthru
        _
      %v139 = vld [vmem:[%s126] sm:$0xff]
      %v140 = vadd.f32 %v139, 0.0
      %v142 = vrot.slane %v139, 4
      %v144 = vmul.f32 %v139, %v142
      %v145 = vadd.f32 %v144, 0.0
      %v146 = vrot.slane %v139, 2
      %v148 = vmul.f32 %v139, %v146
      %v149 = vadd.f32 %v148, 0.0
      %v150 = vld [vmem:[#allocation2] sm:$0xff]
      %v151 = vadd.f32 %v150, %v140
      %152 = vst [vmem:[#allocation2] sm:$0xff] %v151
      %v153 = vld [vmem:[#allocation3] sm:$0x3]
      %v154 = vadd.f32 %v153, %v145
      %155 = vst [vmem:[#allocation3] sm:$0x3] %v154
      %v156 = vld [vmem:[#allocation3 + $0x2] sm:$0x3]
      %v158 = vrot.slane %v149, 2
      %v160 = vadd.f32 %v156, %v158
      %161 = vst [vmem:[#allocation3 + $0x2] sm:$0x3] %v160
      // Predicated region
      $region29: #{fair_loss_forward.1} parent=23 // pred_check
        %p162 = pneg %p133
      $region30: #{fair_loss_forward.1} parent=23 // pred_check_branch
        %164 = sbr.rel (%p162) target = $region32
      $region31: #{fair_loss_forward.1} parent=23 // pred_region
        %v165 = vld [vmem:[#allocation2] sm:$0xff]
        %166 = vst [vmem:[%s132] sm:$0xff] %v165
        %v167 = vld [vmem:[#allocation3] sm:$0xff]
        %168 = vst [vmem:[%s132 + $0x8] sm:$0xff] %v167
      $region32: #{fair_loss_forward.1} parent=23 // pred_fallthru
        _
      %p169 = scmp.lt.s32.totalorder %s16, 1
      %s170 = scalar_select %p169, %s16, 1
      %s171 = smul.addr %s170, 2
      %s172 = smul.addr %s171, 8
      %s173 = scalar_lea.vmem %s1, %s172
      // Predicated region
      $region33: #{fair_loss_forward.1} parent=23 // pred_check
        %p174 = pneg %p70
      $region34: #{fair_loss_forward.1} parent=23 // pred_check_branch
        %176 = sbr.rel (%p174) target = $region36
      $region35: #{fair_loss_forward.1} parent=23 // pred_region
        _
      $region36: #{fair_loss_forward.1} parent=23 // pred_fallthru
        _
    $region24: #{fair_loss_forward.1} parent=5 // pred_fallthru
      _
    %p177 = scmp.le.s32.totalorder 2, %s7
    // Predicated region
    $region37: #{fair_loss_forward.1} parent=5 // pred_check
      %p178 = pneg %p177
    $region38: #{fair_loss_forward.1} parent=5 // pred_check_branch
      %180 = sbr.rel (%p178) target = $region40
    $region39: #{fair_loss_forward.1} parent=5 // pred_region
      %s181 = ssub.s32 %s7, 2
      // Predicated region
      $region41: #{fair_loss_forward.1} parent=39 // pred_check
        %p182 = pneg %p76
      $region42: #{fair_loss_forward.1} parent=39 // pred_check_branch
        %184 = sbr.rel (%p182) target = $region44
      $region43: #{fair_loss_forward.1} parent=39 // pred_region
        %p185 = scmp.lt.s32.totalorder %s18, 1
        %s186 = scalar_select %p185, %s18, 1
        %s187 = smul.addr %s186, 2
        %s188 = smul.addr %s187, 8
        %s189 = scalar_lea.vmem %s1, %s188
      $region44: #{fair_loss_forward.1} parent=39 // pred_fallthru
        _
    $region40: #{fair_loss_forward.1} parent=5 // pred_fallthru
      _
  $region6: #{fair_loss_forward.1} parent=0 // loop_footer
    %s11 = sadd.s32 1, %s7
  $region7: #{fair_loss_forward.1} parent=0 // loop_footer_branch
    %6 = sbr.rel target = $region3
  $region8: #{fair_loss_forward.1} parent=0 // loop_exit
    _

</llo_original>
